<compile_context>
chip_gen: v5e
topology: v5e:2x2
jax: 0.10.0
libtpu: 0.0.40
codegen_flags: <defaults>
</compile_context>

<pallas_src>
import functools
import math

import jax
import jax.numpy as jnp
from jax.experimental import pallas as pl
from jax.experimental.pallas import tpu as pltpu


def _cdiv(a, b):
    return -(-a // b)


def _round_up(n, m):
    return ((n + m - 1) // m) * m


def _fourier_kernel(x_ref, wrow_ref, phase_ref, o_ref, *,
                    half_dim, emb_dim, pack, exact_cos):
    """One grid step over `tile_rows` packed rows.

    x_ref    : (TBp, pack)            `pack` consecutive batch scalars per row
    wrow_ref : (1, emb_dim)           [w, w] * 2*pi   (pre-tiled, pre-scaled)
    phase_ref: (1, emb_dim)           [0]*half_dim ++ [pi/2]*half_dim
    o_ref    : (TBp, pack*emb_dim)    row-major identical to (TBp*pack, emb_dim)
    """
    nrows = x_ref.shape[0]
    if exact_cos:
        # Bit-faithful sin/cos lowering (two half-width stores per p).
        w_half = jnp.broadcast_to(wrow_ref[:, :half_dim], (nrows, half_dim))
        for p in range(pack):  # small static unroll
            x_col = jnp.broadcast_to(x_ref[:, p:p + 1], (nrows, half_dim))
            theta = x_col * w_half
            base = p * emb_dim
            o_ref[:, base:base + half_dim] = jnp.sin(theta)
            o_ref[:, base + half_dim:base + emb_dim] = jnp.cos(theta)
    else:
        # Fused path: cos(t) = sin(t + pi/2)  ->  one emb_dim-wide store per p.
        # Broadcasts hoisted out of the unrolled loop.
        wrow = jnp.broadcast_to(wrow_ref[...], (nrows, emb_dim))
        phase = jnp.broadcast_to(phase_ref[...], (nrows, emb_dim))
        for p in range(pack):  # small static unroll
            x_col = jnp.broadcast_to(x_ref[:, p:p + 1], (nrows, emb_dim))
            o_ref[:, p * emb_dim:(p + 1) * emb_dim] = jnp.sin(x_col * wrow + phase)
    # TODO(synk): for very small emb_dim (pack >= 8) vectorize across p into a
    # single (TBp, lane_width) expression instead of `pack` narrow stores.


def _choose_tile_rows(bp_rows, lane_width, *, target_step_bytes,
                      vmem_budget_bytes, min_steps=4):
    """Pick rows-per-step (multiple of 8), balanced across steps."""
    bytes_per_row = lane_width * 4  # f32 output dominates VMEM / HBM traffic
    # Hard cap: double-buffered output tile must fit the VMEM budget.
    cap_rows = max(8, (vmem_budget_bytes // (2 * bytes_per_row)) // 8 * 8)
    # Soft target: ~target_step_bytes of output per step.
    tgt_rows = max(8, min(cap_rows, (target_step_bytes // bytes_per_row) // 8 * 8))
    # Steps: enough to cover the rows at the target size, and at least
    # `min_steps` (megacore + DMA/compute overlap) while keeping >=8 real
    # rows per step.
    nsteps = max(_cdiv(bp_rows, tgt_rows), min(min_steps, max(1, bp_rows // 8)))
    tile_rows = min(cap_rows, _round_up(_cdiv(bp_rows, nsteps), 8))
    nsteps = _cdiv(bp_rows, tile_rows)
    return tile_rows, nsteps


def fourier_features(x, weights, *, exact_cos=False,
                     target_step_bytes=3 << 19,     # ~1.5 MiB output per step
                     vmem_budget_bytes=12 << 20):   # under v5e's 16 MiB default
    """x: (B,) float, weights: (1, half_dim) float -> (B, 2*half_dim) f32."""
    assert x.ndim == 1 and weights.ndim == 2 and weights.shape[0] == 1
    B = x.shape[0]
    half_dim = weights.shape[1]
    emb_dim = 2 * half_dim

    # ---- constant prep (once, outside the kernel) ---------------------------
    w = weights.astype(jnp.float32).reshape(1, half_dim)
    # Pre-tiled so sin and cos become one fused sin:  sin(t+0), sin(t+pi/2).
    wrow = jnp.concatenate([w, w], axis=-1) * jnp.float32(2.0 * math.pi)
    phase = jnp.concatenate(
        [jnp.zeros((1, half_dim), jnp.float32),
         jnp.full((1, half_dim), 0.5 * math.pi, jnp.float32)], axis=-1)

    # ---- lane-dense packing: output last dim a multiple of 128 --------------
    lcm = emb_dim * 128 // math.gcd(emb_dim, 128)
    if lcm <= 512:
        pack = lcm // emb_dim
    else:
        pack = 1  # TODO(synk): lane-sparse writeback for awkward emb_dim
    lane_width = pack * emb_dim

    # ---- balanced, VMEM-budgeted batch tiling --------------------------------
    bp_rows = _cdiv(B, pack)
    tile_rows, nsteps = _choose_tile_rows(
        bp_rows, lane_width, target_step_bytes=target_step_bytes,
        vmem_budget_bytes=vmem_budget_bytes)
    bp_pad = nsteps * tile_rows
    b_pad = bp_pad * pack

    x_pad = jnp.zeros((b_pad,), jnp.float32).at[:B].set(x.astype(jnp.float32))
    x2 = x_pad.reshape(bp_pad, pack)

    kernel = functools.partial(_fourier_kernel, half_dim=half_dim,
                               emb_dim=emb_dim, pack=pack, exact_cos=exact_cos)

    out_packed = pl.pallas_call(
        kernel,
        out_shape=jax.ShapeDtypeStruct((bp_pad, lane_width), jnp.float32),
        grid_spec=pltpu.PrefetchScalarGridSpec(
            num_scalar_prefetch=0,
            grid=(nsteps,),
            in_specs=[
                pl.BlockSpec((tile_rows, pack), lambda i: (i, 0)),
                pl.BlockSpec((1, emb_dim), lambda i: (0, 0)),
                pl.BlockSpec((1, emb_dim), lambda i: (0, 0)),
            ],
            out_specs=pl.BlockSpec((tile_rows, lane_width), lambda i: (i, 0)),
        ),
        compiler_params=pltpu.CompilerParams(
            dimension_semantics=("parallel",)),
    )(x2, wrow, phase)

    # Free metadata reshape back to the PyTorch layout, then drop padding rows.
    return out_packed.reshape(b_pad, emb_dim)[:B]


def fourier_features_ref(x, weights):
    """Pure-JAX reference mirroring the PyTorch forward."""
    freqs = (x[:, None].astype(jnp.float32) * weights.astype(jnp.float32)
             * 2.0 * math.pi)
    return jnp.concatenate([jnp.sin(freqs), jnp.cos(freqs)], axis=-1)


if __name__ == "__main__":
    key = jax.random.PRNGKey(0)

    # (emb_dim, batch): deployed small shape; ragged batch (not a multiple of
    # pack/tile); emb_dim that doesn't divide 128 (generalized pack);
    # emb_dim that is a multiple of 128 (pack=1 dense path).
    configs = [(64, 8), (64, 261), (96, 40), (256, 16)]
    ok = True
    for emb_dim, batch in configs:
        half_dim = emb_dim // 2
        key, k_w, k_x = jax.random.split(key, 3)
        # Deterministic stand-in for the torch.randn(1, half_dim) buffer.
        weights = jax.random.normal(k_w, (1, half_dim), dtype=jnp.float32)
        # Timestep-like inputs in [0, 1) — the module's deployed input domain.
        x = jax.random.uniform(k_x, (batch,), dtype=jnp.float32)

        ref = fourier_features_ref(x, weights)

        out = jax.block_until_ready(fourier_features(x, weights))
        assert out.shape == (batch, emb_dim), (out.shape, emb_dim, batch)
        # Fused sin(t + pi/2) and folded 2*pi differ from the reference by a
        # few ulps of t; 2e-5 is still tight for f32 here.
        assert jnp.allclose(out, ref, atol=2e-5, rtol=2e-5), (emb_dim, batch)

        out_exact = jax.block_until_ready(
            fourier_features(x, weights, exact_cos=True))
        assert out_exact.shape == (batch, emb_dim)
        assert jnp.allclose(out_exact, ref, atol=2e-5, rtol=2e-5), (emb_dim, batch)

    if ok:
        print("KERNEL_OK")
</pallas_src>

<mosaic_0001>
module attributes {stable_mosaic.version = 11 : i64} {
  func.func @_fourier_kernel(%arg0: i32, %arg1: memref<8x2xf32, #tpu.memory_space<vmem>>, %arg2: memref<1x64xf32, #tpu.memory_space<vmem>>, %arg3: memref<1x64xf32, #tpu.memory_space<vmem>>, %arg4: memref<8x128xf32, #tpu.memory_space<vmem>>) attributes {dimension_semantics = [#tpu.dimension_semantics<parallel>], iteration_bounds = array<i64: 1>, scalar_prefetch = 0 : i64, scratch_operands = 0 : i64, tpu.core_type = #tpu.core_type<tc>, window_params = [{transform_indices = @transform_0, window_bounds = array<i64: 8, 2>}, {pipeline_mode = #tpu.pipeline_mode<synchronous>, transform_indices = @transform_1, window_bounds = array<i64: 1, 64>}, {pipeline_mode = #tpu.pipeline_mode<synchronous>, transform_indices = @transform_2, window_bounds = array<i64: 1, 64>}, {transform_indices = @transform_3, window_bounds = array<i64: 8, 128>}]} {
    %c0 = arith.constant 0 : index
    %c0_0 = arith.constant 0 : index
    %0 = vector.load %arg2[%c0, %c0_0] : memref<1x64xf32, #tpu.memory_space<vmem>>, vector<1x64xf32>
    %1 = vector.shape_cast %0 : vector<1x64xf32> to vector<1x64xf32>
    %2 = vector.broadcast %1 : vector<1x64xf32> to vector<8x64xf32>
    %c0_1 = arith.constant 0 : index
    %c0_2 = arith.constant 0 : index
    %3 = vector.load %arg3[%c0_1, %c0_2] : memref<1x64xf32, #tpu.memory_space<vmem>>, vector<1x64xf32>
    %4 = vector.shape_cast %3 : vector<1x64xf32> to vector<1x64xf32>
    %5 = vector.broadcast %4 : vector<1x64xf32> to vector<8x64xf32>
    %c0_3 = arith.constant 0 : index
    %c0_4 = arith.constant 0 : index
    %6 = vector.load %arg1[%c0_3, %c0_4] : memref<8x2xf32, #tpu.memory_space<vmem>>, vector<8x1xf32>
    %7 = vector.shape_cast %6 : vector<8x1xf32> to vector<8x1xf32>
    %8 = vector.broadcast %7 : vector<8x1xf32> to vector<8x64xf32>
    %9 = arith.mulf %8, %2 : vector<8x64xf32>
    %10 = arith.addf %9, %5 : vector<8x64xf32>
    %11 = math.sin %10 : vector<8x64xf32>
    %c0_5 = arith.constant 0 : index
    %c0_6 = arith.constant 0 : index
    %12 = vector.load %arg4[%c0_5, %c0_6] : memref<8x128xf32, #tpu.memory_space<vmem>>, vector<8x64xf32>
    tpu.vector_store %arg4[%c0_5, %c0_6], %11 {strides = array<i32>} : memref<8x128xf32, #tpu.memory_space<vmem>>, vector<8x64xf32>,
    %c0_7 = arith.constant 0 : index
    %c1 = arith.constant 1 : index
    %13 = vector.load %arg1[%c0_7, %c1] : memref<8x2xf32, #tpu.memory_space<vmem>>, vector<8x1xf32>
    %14 = vector.shape_cast %13 : vector<8x1xf32> to vector<8x1xf32>
    %15 = vector.broadcast %14 : vector<8x1xf32> to vector<8x64xf32>
    %16 = arith.mulf %15, %2 : vector<8x64xf32>
    %17 = arith.addf %16, %5 : vector<8x64xf32>
    %18 = math.sin %17 : vector<8x64xf32>
    %c0_8 = arith.constant 0 : index
    %c64 = arith.constant 64 : index
    %19 = vector.load %arg4[%c0_8, %c64] : memref<8x128xf32, #tpu.memory_space<vmem>>, vector<8x64xf32>
    tpu.vector_store %arg4[%c0_8, %c64], %18 {strides = array<i32>} : memref<8x128xf32, #tpu.memory_space<vmem>>, vector<8x64xf32>,
    return
  }
  func.func @transform_0(%arg0: i32) -> (i32, i32) {
    %c0_i32 = arith.constant 0 : i32
    %c0_i32_0 = arith.constant 0 : i32
    return %arg0, %c0_i32 : i32, i32
  }
  func.func @transform_1(%arg0: i32) -> (i32, i32) {
    %c0_i32 = arith.constant 0 : i32
    %c0_i32_0 = arith.constant 0 : i32
    %c0_i32_1 = arith.constant 0 : i32
    return %c0_i32, %c0_i32_0 : i32, i32
  }
  func.func @transform_2(%arg0: i32) -> (i32, i32) {
    %c0_i32 = arith.constant 0 : i32
    %c0_i32_0 = arith.constant 0 : i32
    %c0_i32_1 = arith.constant 0 : i32
    return %c0_i32, %c0_i32_0 : i32, i32
  }
  func.func @transform_3(%arg0: i32) -> (i32, i32) {
    %c0_i32 = arith.constant 0 : i32
    %c0_i32_0 = arith.constant 0 : i32
    return %arg0, %c0_i32 : i32, i32
  }
}

</mosaic_0001>

<llo_original>
// kernel: tpu_custom_call.1
$region0: #{tpu_custom_call.1}
  #allocation0 [shape = 'u32[]', space=smem, size = 0x4, offset = 0x4, fixed_abs, tag = 'smem constant byte address 0x4 - core index']
  #allocation1 [shape = 'u32[72,128]{1,0:T(1,128)}', space=vmem, size = 0x9000, scoped, tag = 'internal scratch']
  %s0 = inlined_call_operand.vmem [shape: f32[8,2], index: 0, kind: input, shape index: {}]
  %s1 = inlined_call_operand.vmem [shape: f32[1,64], index: 1, kind: input, shape index: {}]
  %s2 = inlined_call_operand.vmem [shape: f32[1,64], index: 2, kind: input, shape index: {}]
  %s3 = inlined_call_operand.hbm [shape: f32[8,128], index: 3, kind: output, shape index: {}]
  %s4 = sld [smem:[#allocation0]]
  $region22: #{tpu_custom_call.1} parent=0
    _
  %s6 = ssub.s32 1, %s4
  %s7 = scalar_select 0, %s6, %s4
  $region1: #{tpu_custom_call.1} parent=0
    #allocation2 [shape = 'u8[4096]{0}', space=vmem, size = 0x1000, scoped, tag = 'output window, operand 0, single buffered']
    #allocation3 [shape = 's32[1]{0}', space=sflag, size = 0x4, scoped, tag = 'scoped memory for tpu_custom_call.1']
    %8 = vsyncpa [#allocation3], 0
    // Predicated region
    $region2: #{tpu_custom_call.1} parent=1 // pred_check
      _
    $region3: #{tpu_custom_call.1} parent=1 // pred_check_branch
      %10 = sbr.rel (0) target = $region5
    $region4: #{tpu_custom_call.1} parent=1 // pred_region
      _
    $region5: #{tpu_custom_call.1} parent=1 // pred_fallthru
      _
    // Predicated region
    $region6: #{tpu_custom_call.1} parent=1 // pred_check
      _
    $region7: #{tpu_custom_call.1} parent=1 // pred_check_branch
      %12 = sbr.rel (0) target = $region9
    $region8: #{tpu_custom_call.1} parent=1 // pred_region
      _
    $region9: #{tpu_custom_call.1} parent=1 // pred_fallthru
      _
    // Predicated region
    $region10: #{tpu_custom_call.1} parent=1 // pred_check
      _
    $region11: #{tpu_custom_call.1} parent=1 // pred_check_branch
      %14 = sbr.rel (0) target = $region13
    $region12: #{tpu_custom_call.1} parent=1 // pred_region
      _
    $region13: #{tpu_custom_call.1} parent=1 // pred_fallthru
      _
    %v15 = vld [vmem:[%s1] sm:$0x1]
    %v17 = vperm.slane %v15, 0
    %v19 = vld [vmem:[%s2] sm:$0x1]
    %v21 = vperm.slane %v19, 0
    %v23 = vld [vmem:[%s0] sm:$0xff]
    %25 = vset.pattern.permute.xlu0 0
    %26 = vperm.xlu0 %25, %v23
    %v27 = vpop.permute.xlu0 %26
    %v29 = vmul.f32 %v27, %v17
    %v30 = vadd.f32 %v29, %v21
    %v31 = vand.u32 2147483647, %v30
    %vm32 = vcmp.le.f32.partialorder %v31, 0.7853982
    %vm33 = vcmp.lt.s32.totalorder %v30, 0
    %v34 = vand.u32 %v30, 2139095040
    %v35 = vshrl.u32 %v34, 23
    %v36 = vsub.s32 %v35, 127
    %v37 = vand.u32 2147483647, %v30
    %v38 = vand.u32 %v37, 8388607
    %v39 = vor.u32 %v38, 8388608
    %v40 = vsub.s32 0, %v39
    %v41 = vadd.s32 %v36, 1
    %vm42 = vcmp.gt.s32.totalorder %v41, 0
    %v43 = vsel %vm42, %v41, 0
    %v44 = vshrl.u32 %v43, 5
    %v45 = vand.u32 %v43, 31
    %v46 = vsub.s32 32, %v45
    %v47 = vshrl.u32 683565275, %v46
    %v48 = vshll.u32 683565275, %v45
    %v49 = vshrl.u32 2475754826, %v46
    %v50 = vor.u32 %v48, %v49
    %v51 = vshll.u32 2475754826, %v45
    %v52 = vshrl.u32 2131351028, %v46
    %v53 = vor.u32 %v51, %v52
    %v54 = vshll.u32 2131351028, %v45
    %v55 = vshrl.u32 2102212464, %v46
    %v56 = vor.u32 %v54, %v55
    %v57 = vshll.u32 2102212464, %v45
    %v58 = vshrl.u32 920167782, %v46
    %v59 = vor.u32 %v57, %v58
    %v60 = vshll.u32 920167782, %v45
    %v61 = vshrl.u32 1326507024, %v46
    %v62 = vor.u32 %v60, %v61
    %vm63 = vcmp.lt.s32.totalorder %v44, 1
    %vm64 = vcmp.lt.s32.totalorder %v44, 2
    %vm65 = vcmp.lt.s32.totalorder %v44, 3
    %vm66 = vcmp.lt.s32.totalorder %v44, 4
    %v67 = vsel %vm63, %v47, %v50
    %v68 = vsel %vm66, %v56, 2102212464
    %v69 = vsel %vm65, %v53, %v68
    %v70 = vsel %vm64, %v67, %v69
    %v71 = vsel %vm63, %v50, %v53
    %v72 = vsel %vm66, %v59, 920167782
    %v73 = vsel %vm65, %v56, %v72
    %v74 = vsel %vm64, %v71, %v73
    %v75 = vsel %vm63, %v53, %v56
    %v76 = vsel %vm66, %v62, 1326507024
    %v77 = vsel %vm65, %v59, %v76
    %v78 = vsel %vm64, %v75, %v77
    %v79 = vshll.u32 %v39, 8
    %v80 = vand.u32 %v79, 65535
    %v81 = vshrl.u32 %v79, 16
    %v82 = vand.u32 %v78, 65535
    %v83 = vshrl.u32 %v78, 16
    %v84 = vmul.u32 %v80, %v82
    %v85 = vmul.u32 %v80, %v83
    %v86 = vmul.u32 %v81, %v82
    %v87 = vmul.u32 %v81, %v83
    %v88 = vshll.u32 %v85, 16
    %v89 = vshrl.u32 %v85, 16
    %v90 = vshll.u32 %v86, 16
    %v91 = vshrl.u32 %v86, 16
    %vm92 = vc.u32 %v84, %v88
    %v93 = vsel %vm92, 1, 0
    %v94 = vadd.s32 %v84, %v88
    %v95 = vadd.s32 %v87, %v93
    %vm96 = vc.u32 %v94, %v90
    %v97 = vsel %vm96, 1, 0
    %v98 = vadd.s32 %v94, %v90
    %v99 = vadd.s32 %v95, %v97
    %v100 = vadd.s32 %v99, %v89
    %v101 = vadd.s32 %v100, %v91
    %v102 = vand.u32 %v79, 65535
    %v103 = vshrl.u32 %v79, 16
    %v104 = vand.u32 %v74, 65535
    %v105 = vshrl.u32 %v74, 16
    %v106 = vmul.u32 %v102, %v104
    %v107 = vmul.u32 %v102, %v105
    %v108 = vmul.u32 %v103, %v104
    %v109 = vmul.u32 %v103, %v105
    %v110 = vshll.u32 %v107, 16
    %v111 = vshrl.u32 %v107, 16
    %v112 = vshll.u32 %v108, 16
    %v113 = vshrl.u32 %v108, 16
    %vm114 = vc.u32 %v106, %v110
    %v115 = vsel %vm114, 1, 0
    %v116 = vadd.s32 %v106, %v110
    %v117 = vadd.s32 %v109, %v115
    %vm118 = vc.u32 %v116, %v112
    %v119 = vsel %vm118, 1, 0
    %v120 = vadd.s32 %v116, %v112
    %v121 = vadd.s32 %v117, %v119
    %v122 = vadd.s32 %v121, %v111
    %v123 = vadd.s32 %v122, %v113
    %v124 = vmul.u32 %v79, %v70
    %v125 = vadd.s32 %v101, %v120
    %vm126 = vc.u32 %v101, %v120
    %v127 = vadd.s32 %v123, 1
    %v128 = vsel %vm126, %v127, %v123
    %v129 = vadd.s32 %v124, %v128
    %v130 = vadd.s32 %v129, 536870912
    %v131 = vshrl.u32 %v130, 30
    %v132 = vshll.u32 %v131, 30
    %v133 = vsub.s32 %v129, %v132
    %vm134 = vcmp.lt.s32.totalorder %v133, 0
    %v135 = vsub.s32 0, %v133
    %v136 = vsel %vm134, %v135, %v133
    %v137 = vclz %v136
    %v138 = vsub.s32 %v137, 2
    %vm139 = vcmp.gt.s32.totalorder 0, %v138
    %v140 = vsel %vm139, 0, %v138
    %v141 = vsub.s32 32, %v140
    %v142 = vshll.u32 %v133, %v140
    %v143 = vshrl.u32 %v125, %v141
    %v144 = vor.u32 %v142, %v143
    %v145 = vsub.s32 4294967266, %v140
    %v146 = vadd.s32 %v145, 127
    %v147 = vshll.u32 %v146, 23
    %v148 = vor.u32 4788187, %v147
    %v149 = vand.u32 2147483647, %v148
    %v151 = vcvt.s32.f32 %v144
    %v152 = vmul.f32 %v151, %v149
    %v153 = vxor.u32 %v152, 2147483648
    %v154 = vsel %vm33, %v153, %v152
    %v155 = vsub.s32 4, %v131
    %v156 = vsel %vm33, %v155, %v131
    %v157 = vsel %vm32, %v30, %v154
    %v158 = vsel %vm32, 0, %v156
    %v159 = vmul.f32 %v157, %v157
    %v160 = vmul.f32 %v159, -0.001358992
    %v161 = vadd.f32 %v160, 0.041655596
    %v162 = vmul.f32 %v159, %v161
    %v163 = vadd.f32 %v162, -0.4999988
    %v164 = vmul.f32 %v159, %v163
    %v165 = vadd.f32 1.0, %v164
    %v166 = vmul.f32 %v157, %v157
    %v167 = vmul.f32 %v166, -0.00019511016
    %v168 = vadd.f32 %v167, 0.008332121
    %v169 = vmul.f32 %v166, %v168
    %v170 = vadd.f32 %v169, -0.16666654
    %v171 = vmul.f32 %v166, %v170
    %v172 = vadd.f32 %v171, 1.0
    %v173 = vmul.f32 %v172, %v157
    %vm174 = vweird.f32 %v30
    %v175 = vadd.s32 %v158, 3
    %v176 = vand.u32 %v175, 3
    %vm177 = vcmp.lt.s32.totalorder %v176, 2
    %vm178 = vcmp.eq.s32.totalorder %v176, 0
    %v179 = vxor.u32 %v173, 2147483648
    %v180 = vsel %vm178, %v165, %v179
    %vm181 = vcmp.eq.s32.totalorder %v176, 2
    %v182 = vxor.u32 %v165, 2147483648
    %v183 = vsel %vm181, %v182, %v173
    %v184 = vsel %vm177, %v180, %v183
    %v185 = vsel %vm174, nan, %v184
    %vm186 = vcmask 523264
    %187 = vst.msk [vmem:[#allocation2] sm:$0xff] %vm186, %v185
    %v188 = vld [vmem:[%s0] sm:$0xff]
    %190 = vset.pattern.permute.xlu0 1
    %191 = vperm.xlu0 %190, %v188
    %v192 = vpop.permute.xlu0 %191
    %v194 = vmul.f32 %v192, %v17
    %v195 = vadd.f32 %v194, %v21
    %v196 = vand.u32 2147483647, %v195
    %vm197 = vcmp.le.f32.partialorder %v196, 0.7853982
    %vm198 = vcmp.lt.s32.totalorder %v195, 0
    %v199 = vand.u32 %v195, 2139095040
    %v200 = vshrl.u32 %v199, 23
    %v201 = vsub.s32 %v200, 127
    %v202 = vand.u32 2147483647, %v195
    %v203 = vand.u32 %v202, 8388607
    %v204 = vor.u32 %v203, 8388608
    %v205 = vsub.s32 0, %v204
    %v206 = vadd.s32 %v201, 1
    %vm207 = vcmp.gt.s32.totalorder %v206, 0
    %v208 = vsel %vm207, %v206, 0
    %v209 = vshrl.u32 %v208, 5
    %v210 = vand.u32 %v208, 31
    %v211 = vsub.s32 32, %v210
    %v212 = vshrl.u32 683565275, %v211
    %v213 = vshll.u32 683565275, %v210
    %v214 = vshrl.u32 2475754826, %v211
    %v215 = vor.u32 %v213, %v214
    %v216 = vshll.u32 2475754826, %v210
    %v217 = vshrl.u32 2131351028, %v211
    %v218 = vor.u32 %v216, %v217
    %v219 = vshll.u32 2131351028, %v210
    %v220 = vshrl.u32 2102212464, %v211
    %v221 = vor.u32 %v219, %v220
    %v222 = vshll.u32 2102212464, %v210
    %v223 = vshrl.u32 920167782, %v211
    %v224 = vor.u32 %v222, %v223
    %v225 = vshll.u32 920167782, %v210
    %v226 = vshrl.u32 1326507024, %v211
    %v227 = vor.u32 %v225, %v226
    %vm228 = vcmp.lt.s32.totalorder %v209, 1
    %vm229 = vcmp.lt.s32.totalorder %v209, 2
    %vm230 = vcmp.lt.s32.totalorder %v209, 3
    %vm231 = vcmp.lt.s32.totalorder %v209, 4
    %v232 = vsel %vm228, %v212, %v215
    %v233 = vsel %vm231, %v221, 2102212464
    %v234 = vsel %vm230, %v218, %v233
    %v235 = vsel %vm229, %v232, %v234
    %v236 = vsel %vm228, %v215, %v218
    %v237 = vsel %vm231, %v224, 920167782
    %v238 = vsel %vm230, %v221, %v237
    %v239 = vsel %vm229, %v236, %v238
    %v240 = vsel %vm228, %v218, %v221
    %v241 = vsel %vm231, %v227, 1326507024
    %v242 = vsel %vm230, %v224, %v241
    %v243 = vsel %vm229, %v240, %v242
    %v244 = vshll.u32 %v204, 8
    %v245 = vand.u32 %v244, 65535
    %v246 = vshrl.u32 %v244, 16
    %v247 = vand.u32 %v243, 65535
    %v248 = vshrl.u32 %v243, 16
    %v249 = vmul.u32 %v245, %v247
    %v250 = vmul.u32 %v245, %v248
    %v251 = vmul.u32 %v246, %v247
    %v252 = vmul.u32 %v246, %v248
    %v253 = vshll.u32 %v250, 16
    %v254 = vshrl.u32 %v250, 16
    %v255 = vshll.u32 %v251, 16
    %v256 = vshrl.u32 %v251, 16
    %vm257 = vc.u32 %v249, %v253
    %v258 = vsel %vm257, 1, 0
    %v259 = vadd.s32 %v249, %v253
    %v260 = vadd.s32 %v252, %v258
    %vm261 = vc.u32 %v259, %v255
    %v262 = vsel %vm261, 1, 0
    %v263 = vadd.s32 %v259, %v255
    %v264 = vadd.s32 %v260, %v262
    %v265 = vadd.s32 %v264, %v254
    %v266 = vadd.s32 %v265, %v256
    %v267 = vand.u32 %v244, 65535
    %v268 = vshrl.u32 %v244, 16
    %v269 = vand.u32 %v239, 65535
    %v270 = vshrl.u32 %v239, 16
    %v271 = vmul.u32 %v267, %v269
    %v272 = vmul.u32 %v267, %v270
    %v273 = vmul.u32 %v268, %v269
    %v274 = vmul.u32 %v268, %v270
    %v275 = vshll.u32 %v272, 16
    %v276 = vshrl.u32 %v272, 16
    %v277 = vshll.u32 %v273, 16
    %v278 = vshrl.u32 %v273, 16
    %vm279 = vc.u32 %v271, %v275
    %v280 = vsel %vm279, 1, 0
    %v281 = vadd.s32 %v271, %v275
    %v282 = vadd.s32 %v274, %v280
    %vm283 = vc.u32 %v281, %v277
    %v284 = vsel %vm283, 1, 0
    %v285 = vadd.s32 %v281, %v277
    %v286 = vadd.s32 %v282, %v284
    %v287 = vadd.s32 %v286, %v276
    %v288 = vadd.s32 %v287, %v278
    %v289 = vmul.u32 %v244, %v235
    %v290 = vadd.s32 %v266, %v285
    %vm291 = vc.u32 %v266, %v285
    %v292 = vadd.s32 %v288, 1
    %v293 = vsel %vm291, %v292, %v288
    %v294 = vadd.s32 %v289, %v293
    %v295 = vadd.s32 %v294, 536870912
    %v296 = vshrl.u32 %v295, 30
    %v297 = vshll.u32 %v296, 30
    %v298 = vsub.s32 %v294, %v297
    %vm299 = vcmp.lt.s32.totalorder %v298, 0
    %v300 = vsub.s32 0, %v298
    %v301 = vsel %vm299, %v300, %v298
    %v302 = vclz %v301
    %v303 = vsub.s32 %v302, 2
    %vm304 = vcmp.gt.s32.totalorder 0, %v303
    %v305 = vsel %vm304, 0, %v303
    %v306 = vsub.s32 32, %v305
    %v307 = vshll.u32 %v298, %v305
    %v308 = vshrl.u32 %v290, %v306
    %v309 = vor.u32 %v307, %v308
    %v310 = vsub.s32 4294967266, %v305
    %v311 = vadd.s32 %v310, 127
    %v312 = vshll.u32 %v311, 23
    %v313 = vor.u32 4788187, %v312
    %v314 = vand.u32 2147483647, %v313
    %v316 = vcvt.s32.f32 %v309
    %v317 = vmul.f32 %v316, %v314
    %v318 = vxor.u32 %v317, 2147483648
    %v319 = vsel %vm198, %v318, %v317
    %v320 = vsub.s32 4, %v296
    %v321 = vsel %vm198, %v320, %v296
    %v322 = vsel %vm197, %v195, %v319
    %v323 = vsel %vm197, 0, %v321
    %v324 = vmul.f32 %v322, %v322
    %v325 = vmul.f32 %v324, -0.001358992
    %v326 = vadd.f32 %v325, 0.041655596
    %v327 = vmul.f32 %v324, %v326
    %v328 = vadd.f32 %v327, -0.4999988
    %v329 = vmul.f32 %v324, %v328
    %v330 = vadd.f32 1.0, %v329
    %v331 = vmul.f32 %v322, %v322
    %v332 = vmul.f32 %v331, -0.00019511016
    %v333 = vadd.f32 %v332, 0.008332121
    %v334 = vmul.f32 %v331, %v333
    %v335 = vadd.f32 %v334, -0.16666654
    %v336 = vmul.f32 %v331, %v335
    %v337 = vadd.f32 %v336, 1.0
    %v338 = vmul.f32 %v337, %v322
    %vm339 = vweird.f32 %v195
    %v340 = vadd.s32 %v323, 3
    %v341 = vand.u32 %v340, 3
    %vm342 = vcmp.lt.s32.totalorder %v341, 2
    %vm343 = vcmp.eq.s32.totalorder %v341, 0
    %v344 = vxor.u32 %v338, 2147483648
    %v345 = vsel %vm343, %v330, %v344
    %vm346 = vcmp.eq.s32.totalorder %v341, 2
    %v347 = vxor.u32 %v330, 2147483648
    %v348 = vsel %vm346, %v347, %v338
    %v349 = vsel %vm342, %v345, %v348
    %v350 = vsel %vm339, nan, %v349
    %352 = vrot.lane.b32.xlu0 %v350, 64
    %v353 = vpop.permute.xlu0 %352
    %vm355 = vcmask 1048064
    %356 = vst.msk [vmem:[#allocation2] sm:$0xff] %vm355, %v353
    // Predicated region
    $region14: #{tpu_custom_call.1} parent=1 // pred_check
      _
    $region15: #{tpu_custom_call.1} parent=1 // pred_check_branch
      %358 = sbr.rel (0) target = $region17
    $region16: #{tpu_custom_call.1} parent=1 // pred_region
      %360 = vsyncadd [#allocation3], 0
      %s362 = sshll.u32 [#allocation2], 4
      %s363 = int_to_ptr.vmem [resolvable:$true] %s362
      %s364 = sshll.u32 %s3, 4
      %s365 = int_to_ptr.hbm [resolvable:$true] %s364
      %367 = dma.vmem_to_hbm [thread:$0]  %s363, 128, %s365, [#allocation3]
    $region17: #{tpu_custom_call.1} parent=1 // pred_fallthru
      _
    // Predicated region
    $region18: #{tpu_custom_call.1} parent=1 // pred_check
      _
    $region19: #{tpu_custom_call.1} parent=1 // pred_check_branch
      %369 = sbr.rel (0) target = $region21
    $region20: #{tpu_custom_call.1} parent=1 // pred_region
      %371 = dma.done [#allocation3], 128
    $region21: #{tpu_custom_call.1} parent=1 // pred_fallthru
      _
    %372 = vsyncpa [#allocation3], 1

</llo_original>
